<compile_context>
chip_gen: v7x
topology: tpu7x:2x2x1
jax: 0.10.0
libtpu: 0.0.40
codegen_flags: <defaults>
</compile_context>

<pallas_src>
import functools

import numpy as np
import jax
import jax.numpy as jnp
from jax import lax
from jax.experimental import pallas as pl
from jax.experimental.pallas import tpu as pltpu


def _stack_kernel(x_ref, mask_ref, w1_ref, w2_ref, o_ref, im2col_ref, *, W):
    # x_ref:      (1, C, B*HW)    B samples of one chunk, channels-major
    # mask_ref:   (9*Cp, B*HW)    {0,1} border-validity plane per tap (f32)
    # w1_ref:     (L, hid, 9*Cp)  3x3 conv weights, tap-major along K
    # w2_ref:     (L, C, hid)     1x1 conv weights
    # o_ref:      (1, C, B*HW)
    # im2col_ref: (9*Cp, B*HW)    reused VMEM scratch
    C = x_ref.shape[1]
    BHW = x_ref.shape[2]
    Cp = w1_ref.shape[2] // 9
    num_layers = w1_ref.shape[0]

    # Clear the scratch once per grid step so the zero-padded channel rows
    # (rows C..Cp of every tap group) stay zero across all layers.
    im2col_ref[...] = jnp.zeros_like(im2col_ref)

    x = x_ref[0]                                       # (C, B*HW), lane-dense

    offsets = [(oh, ow) for oh in (-1, 0, 1) for ow in (-1, 0, 1)]

    def one_layer(xc, w1, w2):
        xr = jnp.maximum(xc, 0.0)                      # first ReLU (VPU)
        # im2col: 9 lane-rolled, border-masked taps written into the scratch.
        for k, (oh, ow) in enumerate(offsets):
            if oh == 0 and ow == 0:                    # center tap: always valid
                tap = xr
            else:
                shift = (-(oh * W + ow)) % BHW
                tap = pltpu.roll(xr, shift, 1) * mask_ref[pl.ds(k * Cp, C), :]
            im2col_ref[pl.ds(k * Cp, C), :] = tap
        # 3x3 SAME conv as ONE fused-K matmul on the MXU, then second ReLU.
        h = jnp.dot(w1, im2col_ref[...],
                    preferred_element_type=jnp.float32)          # (hid, B*HW)
        h = jnp.maximum(h, 0.0)
        # 1x1 conv + residual add.
        return xc + jnp.dot(w2, h, preferred_element_type=jnp.float32)

    if num_layers <= 4:                                # small L: static unroll
        for layer in range(num_layers):
            x = one_layer(x, w1_ref[layer], w2_ref[layer])
    else:                                              # large L: bounded live set
        x = lax.fori_loop(
            0, num_layers,
            lambda l, xc: one_layer(xc, w1_ref[l], w2_ref[l]), x)

    o_ref[0] = jnp.maximum(x, 0.0).astype(o_ref.dtype)  # final F.relu


def _build_tap_masks(H, W, B, Cp):
    """{0,1} float validity plane per 3x3 tap, shape (9*Cp, B*H*W) (numpy const)."""
    r = np.arange(H)[:, None]
    c = np.arange(W)[None, :]
    chunks = []
    for oh in (-1, 0, 1):
        for ow in (-1, 0, 1):
            valid = ((r + oh >= 0) & (r + oh <= H - 1) &
                     (c + ow >= 0) & (c + ow <= W - 1)).astype(np.float32)
            plane = np.broadcast_to(valid[None], (B, H, W)).reshape(B * H * W)
            chunks.append(np.broadcast_to(plane[None, :], (Cp, B * H * W)))
    return jnp.asarray(np.concatenate(chunks, axis=0))


def residual_stack(x_nchw, w1_stack, w2_stack):
    """Fused Pallas implementation of ResudialStack.forward (NCHW in/out)."""
    N, C, H, W = x_nchw.shape
    L, hid, k9cp = w1_stack.shape
    Cp = k9cp // 9
    HW = H * W

    # >= 2 grid chunks keeps both v7x TensorCores busy; the batch inside a
    # chunk is folded into the lane axis to widen the matmul RHS.
    num_blocks = 2 if (N >= 2 and N % 2 == 0) else 1
    B = N // num_blocks
    BHW = B * HW

    # (N,C,H,W) -> (num_blocks, C, B*HW); a pure metadata reshape when B == 1.
    xb = (x_nchw.reshape(num_blocks, B, C, HW)
                .transpose(0, 2, 1, 3)
                .reshape(num_blocks, C, BHW))

    masks = _build_tap_masks(H, W, B, Cp)               # (9*Cp, B*HW) f32

    kernel = functools.partial(_stack_kernel, W=W)
    out = pl.pallas_call(
        kernel,
        out_shape=jax.ShapeDtypeStruct((num_blocks, C, BHW), x_nchw.dtype),
        grid_spec=pltpu.PrefetchScalarGridSpec(
            num_scalar_prefetch=0,
            grid=(num_blocks,),
            in_specs=[
                pl.BlockSpec((1, C, BHW), lambda n: (n, 0, 0)),
                pl.BlockSpec((9 * Cp, BHW), lambda n: (0, 0)),       # resident
                pl.BlockSpec((L, hid, 9 * Cp), lambda n: (0, 0, 0)),  # resident
                pl.BlockSpec((L, C, hid), lambda n: (0, 0, 0)),       # resident
            ],
            out_specs=pl.BlockSpec((1, C, BHW), lambda n: (n, 0, 0)),
            scratch_shapes=[pltpu.VMEM((9 * Cp, BHW), jnp.float32)],
        ),
        compiler_params=pltpu.CompilerParams(
            dimension_semantics=("parallel",)),
    )(xb, masks, w1_stack, w2_stack)

    return (out.reshape(num_blocks, C, B, H, W)
               .transpose(0, 2, 1, 3, 4)
               .reshape(N, C, H, W))


def prepare_weights(w3_list, w1x1_list):
    """Re-layout PyTorch conv weights for the kernel.

    3x3: (hid, C, 3, 3) -> (hid, 3, 3, C) -> zero-pad C -> (hid, 9*Cp)
    1x1: (C, hid, 1, 1) -> (C, hid)
    Both stacked over layers.
    """
    hid, C = w3_list[0].shape[0], w3_list[0].shape[1]
    Cp = -(-C // 8) * 8                    # pad channels to a full sublane group
    w1s, w2s = [], []
    for w3, w1x1 in zip(w3_list, w1x1_list):
        w3t = jnp.pad(w3.transpose(0, 2, 3, 1),
                      ((0, 0), (0, 0), (0, 0), (0, Cp - C)))
        w1s.append(w3t.reshape(hid, 9 * Cp))
        w2s.append(w1x1[:, :, 0, 0])                     # (C, hid)
    return jnp.stack(w1s), jnp.stack(w2s)


def residual_stack_ref(x, w3_list, w1x1_list):
    """Pure-JAX/XLA reference matching the PyTorch module semantics (NCHW)."""
    for w3, w1x1 in zip(w3_list, w1x1_list):
        xr = jax.nn.relu(x)
        h = lax.conv_general_dilated(
            xr, w3, window_strides=(1, 1), padding="SAME",
            dimension_numbers=("NCHW", "OIHW", "NCHW"))
        h = jax.nn.relu(h)
        y = lax.conv_general_dilated(
            h, w1x1, window_strides=(1, 1), padding="SAME",
            dimension_numbers=("NCHW", "OIHW", "NCHW"))
        x = x + y
    return jax.nn.relu(x)


if __name__ == "__main__":
    # batch=2, in=out channels=4, hidden=8, spatial=16x16, num_res_layers=2
    N, C, H, W = 2, 4, 16, 16
    HID = 8
    NUM_LAYERS = 2

    key = jax.random.PRNGKey(0)
    kx, *kws = jax.random.split(key, 1 + 2 * NUM_LAYERS)

    x = jax.random.normal(kx, (N, C, H, W), dtype=jnp.float32)   # PyTorch NCHW

    w3_list, w1x1_list = [], []
    for i in range(NUM_LAYERS):
        w3_list.append(0.1 * jax.random.normal(
            kws[2 * i], (HID, C, 3, 3), dtype=jnp.float32))       # Conv2d 3x3
        w1x1_list.append(0.1 * jax.random.normal(
            kws[2 * i + 1], (C, HID, 1, 1), dtype=jnp.float32))   # Conv2d 1x1

    w1_stack, w2_stack = prepare_weights(w3_list, w1x1_list)

    out = residual_stack(x, w1_stack, w2_stack)
    out = jax.block_until_ready(out)

    ref = residual_stack_ref(x, w3_list, w1x1_list)
    assert out.shape == (N, C, H, W)
    assert jnp.allclose(out, ref, atol=2e-4, rtol=2e-4), "mismatch vs reference"

    print("KERNEL_OK")
</pallas_src>

<mosaic_0001>
module attributes {stable_mosaic.version = 11 : i64} {
  func.func @_stack_kernel(%arg0: i32, %arg1: memref<1x4x256xf32, #tpu.memory_space<vmem>>, %arg2: memref<72x256xf32, #tpu.memory_space<vmem>>, %arg3: memref<2x8x72xf32, #tpu.memory_space<vmem>>, %arg4: memref<2x4x8xf32, #tpu.memory_space<vmem>>, %arg5: memref<1x4x256xf32, #tpu.memory_space<vmem>>, %arg6: memref<72x256xf32, #tpu.memory_space<vmem>>) attributes {dimension_semantics = [#tpu.dimension_semantics<parallel>], iteration_bounds = array<i64: 2>, scalar_prefetch = 0 : i64, scratch_operands = 1 : i64, tpu.core_type = #tpu.core_type<tc>, window_params = [{transform_indices = @transform_0, window_bounds = array<i64: 1, 4, 256>}, {pipeline_mode = #tpu.pipeline_mode<synchronous>, transform_indices = @transform_1, window_bounds = array<i64: 72, 256>}, {pipeline_mode = #tpu.pipeline_mode<synchronous>, transform_indices = @transform_2, window_bounds = array<i64: 2, 8, 72>}, {pipeline_mode = #tpu.pipeline_mode<synchronous>, transform_indices = @transform_3, window_bounds = array<i64: 2, 4, 8>}, {transform_indices = @transform_4, window_bounds = array<i64: 1, 4, 256>}]} {
    %cst = arith.constant 0.000000e+00 : f32
    %0 = vector.broadcast %cst : f32 to vector<72x256xf32>
    %c0 = arith.constant 0 : index
    %c0_0 = arith.constant 0 : index
    %1 = vector.load %arg6[%c0, %c0_0] : memref<72x256xf32, #tpu.memory_space<vmem>>, vector<72x256xf32>
    tpu.vector_store %arg6[%c0, %c0_0], %0 {strides = array<i32>} : memref<72x256xf32, #tpu.memory_space<vmem>>, vector<72x256xf32>,
    %c0_1 = arith.constant 0 : index
    %c0_2 = arith.constant 0 : index
    %c0_3 = arith.constant 0 : index
    %2 = vector.load %arg1[%c0_1, %c0_2, %c0_3] : memref<1x4x256xf32, #tpu.memory_space<vmem>>, vector<1x4x256xf32>
    %3 = vector.shape_cast %2 : vector<1x4x256xf32> to vector<4x256xf32>
    %c0_4 = arith.constant 0 : index
    %c0_5 = arith.constant 0 : index
    %c0_6 = arith.constant 0 : index
    %4 = vector.load %arg3[%c0_4, %c0_5, %c0_6] : memref<2x8x72xf32, #tpu.memory_space<vmem>>, vector<1x8x72xf32>
    %5 = vector.shape_cast %4 : vector<1x8x72xf32> to vector<8x72xf32>
    %c0_7 = arith.constant 0 : index
    %c0_8 = arith.constant 0 : index
    %c0_9 = arith.constant 0 : index
    %6 = vector.load %arg4[%c0_7, %c0_8, %c0_9] : memref<2x4x8xf32, #tpu.memory_space<vmem>>, vector<1x4x8xf32>
    %7 = vector.shape_cast %6 : vector<1x4x8xf32> to vector<4x8xf32>
    %cst_10 = arith.constant 0.000000e+00 : f32
    %8 = vector.broadcast %cst_10 : f32 to vector<4x256xf32>
    %9 = arith.maximumf %3, %8 : vector<4x256xf32>
    %c17_i32 = arith.constant 17 : i32
    %10 = tpu.dynamic_rotate %9 by %c17_i32 dim 1 : vector<4x256xf32>, i32 -> vector<4x256xf32>
    %c0_11 = arith.constant 0 : index
    %c0_12 = arith.constant 0 : index
    %11 = vector.load %arg2[%c0_11, %c0_12] : memref<72x256xf32, #tpu.memory_space<vmem>>, vector<4x256xf32>
    %12 = arith.mulf %10, %11 : vector<4x256xf32>
    %c0_13 = arith.constant 0 : index
    %c0_14 = arith.constant 0 : index
    %13 = vector.load %arg6[%c0_13, %c0_14] : memref<72x256xf32, #tpu.memory_space<vmem>>, vector<4x256xf32>
    tpu.vector_store %arg6[%c0_13, %c0_14], %12 {strides = array<i32>} : memref<72x256xf32, #tpu.memory_space<vmem>>, vector<4x256xf32>,
    %c16_i32 = arith.constant 16 : i32
    %14 = tpu.dynamic_rotate %9 by %c16_i32 dim 1 : vector<4x256xf32>, i32 -> vector<4x256xf32>
    %c8 = arith.constant 8 : index
    %c0_15 = arith.constant 0 : index
    %15 = vector.load %arg2[%c8, %c0_15] : memref<72x256xf32, #tpu.memory_space<vmem>>, vector<4x256xf32>
    %16 = arith.mulf %14, %15 : vector<4x256xf32>
    %c8_16 = arith.constant 8 : index
    %c0_17 = arith.constant 0 : index
    %17 = vector.load %arg6[%c8_16, %c0_17] : memref<72x256xf32, #tpu.memory_space<vmem>>, vector<4x256xf32>
    tpu.vector_store %arg6[%c8_16, %c0_17], %16 {strides = array<i32>} : memref<72x256xf32, #tpu.memory_space<vmem>>, vector<4x256xf32>,
    %c15_i32 = arith.constant 15 : i32
    %18 = tpu.dynamic_rotate %9 by %c15_i32 dim 1 : vector<4x256xf32>, i32 -> vector<4x256xf32>
    %c16 = arith.constant 16 : index
    %c0_18 = arith.constant 0 : index
    %19 = vector.load %arg2[%c16, %c0_18] : memref<72x256xf32, #tpu.memory_space<vmem>>, vector<4x256xf32>
    %20 = arith.mulf %18, %19 : vector<4x256xf32>
    %c16_19 = arith.constant 16 : index
    %c0_20 = arith.constant 0 : index
    %21 = vector.load %arg6[%c16_19, %c0_20] : memref<72x256xf32, #tpu.memory_space<vmem>>, vector<4x256xf32>
    tpu.vector_store %arg6[%c16_19, %c0_20], %20 {strides = array<i32>} : memref<72x256xf32, #tpu.memory_space<vmem>>, vector<4x256xf32>,
    %c1_i32 = arith.constant 1 : i32
    %22 = tpu.dynamic_rotate %9 by %c1_i32 dim 1 : vector<4x256xf32>, i32 -> vector<4x256xf32>
    %c24 = arith.constant 24 : index
    %c0_21 = arith.constant 0 : index
    %23 = vector.load %arg2[%c24, %c0_21] : memref<72x256xf32, #tpu.memory_space<vmem>>, vector<4x256xf32>
    %24 = arith.mulf %22, %23 : vector<4x256xf32>
    %c24_22 = arith.constant 24 : index
    %c0_23 = arith.constant 0 : index
    %25 = vector.load %arg6[%c24_22, %c0_23] : memref<72x256xf32, #tpu.memory_space<vmem>>, vector<4x256xf32>
    tpu.vector_store %arg6[%c24_22, %c0_23], %24 {strides = array<i32>} : memref<72x256xf32, #tpu.memory_space<vmem>>, vector<4x256xf32>,
    %c32 = arith.constant 32 : index
    %c0_24 = arith.constant 0 : index
    %26 = vector.load %arg6[%c32, %c0_24] : memref<72x256xf32, #tpu.memory_space<vmem>>, vector<4x256xf32>
    tpu.vector_store %arg6[%c32, %c0_24], %9 {strides = array<i32>} : memref<72x256xf32, #tpu.memory_space<vmem>>, vector<4x256xf32>,
    %c255_i32 = arith.constant 255 : i32
    %27 = tpu.dynamic_rotate %9 by %c255_i32 dim 1 : vector<4x256xf32>, i32 -> vector<4x256xf32>
    %c40 = arith.constant 40 : index
    %c0_25 = arith.constant 0 : index
    %28 = vector.load %arg2[%c40, %c0_25] : memref<72x256xf32, #tpu.memory_space<vmem>>, vector<4x256xf32>
    %29 = arith.mulf %27, %28 : vector<4x256xf32>
    %c40_26 = arith.constant 40 : index
    %c0_27 = arith.constant 0 : index
    %30 = vector.load %arg6[%c40_26, %c0_27] : memref<72x256xf32, #tpu.memory_space<vmem>>, vector<4x256xf32>
    tpu.vector_store %arg6[%c40_26, %c0_27], %29 {strides = array<i32>} : memref<72x256xf32, #tpu.memory_space<vmem>>, vector<4x256xf32>,
    %c241_i32 = arith.constant 241 : i32
    %31 = tpu.dynamic_rotate %9 by %c241_i32 dim 1 : vector<4x256xf32>, i32 -> vector<4x256xf32>
    %c48 = arith.constant 48 : index
    %c0_28 = arith.constant 0 : index
    %32 = vector.load %arg2[%c48, %c0_28] : memref<72x256xf32, #tpu.memory_space<vmem>>, vector<4x256xf32>
    %33 = arith.mulf %31, %32 : vector<4x256xf32>
    %c48_29 = arith.constant 48 : index
    %c0_30 = arith.constant 0 : index
    %34 = vector.load %arg6[%c48_29, %c0_30] : memref<72x256xf32, #tpu.memory_space<vmem>>, vector<4x256xf32>
    tpu.vector_store %arg6[%c48_29, %c0_30], %33 {strides = array<i32>} : memref<72x256xf32, #tpu.memory_space<vmem>>, vector<4x256xf32>,
    %c240_i32 = arith.constant 240 : i32
    %35 = tpu.dynamic_rotate %9 by %c240_i32 dim 1 : vector<4x256xf32>, i32 -> vector<4x256xf32>
    %c56 = arith.constant 56 : index
    %c0_31 = arith.constant 0 : index
    %36 = vector.load %arg2[%c56, %c0_31] : memref<72x256xf32, #tpu.memory_space<vmem>>, vector<4x256xf32>
    %37 = arith.mulf %35, %36 : vector<4x256xf32>
    %c56_32 = arith.constant 56 : index
    %c0_33 = arith.constant 0 : index
    %38 = vector.load %arg6[%c56_32, %c0_33] : memref<72x256xf32, #tpu.memory_space<vmem>>, vector<4x256xf32>
    tpu.vector_store %arg6[%c56_32, %c0_33], %37 {strides = array<i32>} : memref<72x256xf32, #tpu.memory_space<vmem>>, vector<4x256xf32>,
    %c239_i32 = arith.constant 239 : i32
    %39 = tpu.dynamic_rotate %9 by %c239_i32 dim 1 : vector<4x256xf32>, i32 -> vector<4x256xf32>
    %c64 = arith.constant 64 : index
    %c0_34 = arith.constant 0 : index
    %40 = vector.load %arg2[%c64, %c0_34] : memref<72x256xf32, #tpu.memory_space<vmem>>, vector<4x256xf32>
    %41 = arith.mulf %39, %40 : vector<4x256xf32>
    %c64_35 = arith.constant 64 : index
    %c0_36 = arith.constant 0 : index
    %42 = vector.load %arg6[%c64_35, %c0_36] : memref<72x256xf32, #tpu.memory_space<vmem>>, vector<4x256xf32>
    tpu.vector_store %arg6[%c64_35, %c0_36], %41 {strides = array<i32>} : memref<72x256xf32, #tpu.memory_space<vmem>>, vector<4x256xf32>,
    %c0_37 = arith.constant 0 : index
    %c0_38 = arith.constant 0 : index
    %43 = vector.load %arg6[%c0_37, %c0_38] : memref<72x256xf32, #tpu.memory_space<vmem>>, vector<72x256xf32>
    %cst_39 = arith.constant dense<0.000000e+00> : vector<8x256xf32>
    %44 = tpu.matmul %5, %43, %cst_39 {dimension_numbers = #tpu.dot_dimension_numbers<[1], [0], [0], [1], [0, 0, 1, 1], [], []>} : vector<8x72xf32>, vector<72x256xf32>, vector<8x256xf32> -> vector<8x256xf32>
    %cst_40 = arith.constant 0.000000e+00 : f32
    %45 = vector.broadcast %cst_40 : f32 to vector<8x256xf32>
    %46 = arith.maximumf %44, %45 : vector<8x256xf32>
    %cst_41 = arith.constant dense<0.000000e+00> : vector<4x256xf32>
    %47 = tpu.matmul %7, %46, %cst_41 {dimension_numbers = #tpu.dot_dimension_numbers<[1], [0], [0], [1], [0, 0, 1, 1], [], []>} : vector<4x8xf32>, vector<8x256xf32>, vector<4x256xf32> -> vector<4x256xf32>
    %48 = arith.addf %3, %47 : vector<4x256xf32>
    %c1 = arith.constant 1 : index
    %c0_42 = arith.constant 0 : index
    %c0_43 = arith.constant 0 : index
    %49 = vector.load %arg3[%c1, %c0_42, %c0_43] : memref<2x8x72xf32, #tpu.memory_space<vmem>>, vector<1x8x72xf32>
    %50 = vector.shape_cast %49 : vector<1x8x72xf32> to vector<8x72xf32>
    %c1_44 = arith.constant 1 : index
    %c0_45 = arith.constant 0 : index
    %c0_46 = arith.constant 0 : index
    %51 = vector.load %arg4[%c1_44, %c0_45, %c0_46] : memref<2x4x8xf32, #tpu.memory_space<vmem>>, vector<1x4x8xf32>
    %52 = vector.shape_cast %51 : vector<1x4x8xf32> to vector<4x8xf32>
    %cst_47 = arith.constant 0.000000e+00 : f32
    %53 = vector.broadcast %cst_47 : f32 to vector<4x256xf32>
    %54 = arith.maximumf %48, %53 : vector<4x256xf32>
    %c17_i32_48 = arith.constant 17 : i32
    %55 = tpu.dynamic_rotate %54 by %c17_i32_48 dim 1 : vector<4x256xf32>, i32 -> vector<4x256xf32>
    %c0_49 = arith.constant 0 : index
    %c0_50 = arith.constant 0 : index
    %56 = vector.load %arg2[%c0_49, %c0_50] : memref<72x256xf32, #tpu.memory_space<vmem>>, vector<4x256xf32>
    %57 = arith.mulf %55, %56 : vector<4x256xf32>
    %c0_51 = arith.constant 0 : index
    %c0_52 = arith.constant 0 : index
    %58 = vector.load %arg6[%c0_51, %c0_52] : memref<72x256xf32, #tpu.memory_space<vmem>>, vector<4x256xf32>
    tpu.vector_store %arg6[%c0_51, %c0_52], %57 {strides = array<i32>} : memref<72x256xf32, #tpu.memory_space<vmem>>, vector<4x256xf32>,
    %c16_i32_53 = arith.constant 16 : i32
    %59 = tpu.dynamic_rotate %54 by %c16_i32_53 dim 1 : vector<4x256xf32>, i32 -> vector<4x256xf32>
    %c8_54 = arith.constant 8 : index
    %c0_55 = arith.constant 0 : index
    %60 = vector.load %arg2[%c8_54, %c0_55] : memref<72x256xf32, #tpu.memory_space<vmem>>, vector<4x256xf32>
    %61 = arith.mulf %59, %60 : vector<4x256xf32>
    %c8_56 = arith.constant 8 : index
    %c0_57 = arith.constant 0 : index
    %62 = vector.load %arg6[%c8_56, %c0_57] : memref<72x256xf32, #tpu.memory_space<vmem>>, vector<4x256xf32>
    tpu.vector_store %arg6[%c8_56, %c0_57], %61 {strides = array<i32>} : memref<72x256xf32, #tpu.memory_space<vmem>>, vector<4x256xf32>,
    %c15_i32_58 = arith.constant 15 : i32
    %63 = tpu.dynamic_rotate %54 by %c15_i32_58 dim 1 : vector<4x256xf32>, i32 -> vector<4x256xf32>
    %c16_59 = arith.constant 16 : index
    %c0_60 = arith.constant 0 : index
    %64 = vector.load %arg2[%c16_59, %c0_60] : memref<72x256xf32, #tpu.memory_space<vmem>>, vector<4x256xf32>
    %65 = arith.mulf %63, %64 : vector<4x256xf32>
    %c16_61 = arith.constant 16 : index
    %c0_62 = arith.constant 0 : index
    %66 = vector.load %arg6[%c16_61, %c0_62] : memref<72x256xf32, #tpu.memory_space<vmem>>, vector<4x256xf32>
    tpu.vector_store %arg6[%c16_61, %c0_62], %65 {strides = array<i32>} : memref<72x256xf32, #tpu.memory_space<vmem>>, vector<4x256xf32>,
    %c1_i32_63 = arith.constant 1 : i32
    %67 = tpu.dynamic_rotate %54 by %c1_i32_63 dim 1 : vector<4x256xf32>, i32 -> vector<4x256xf32>
    %c24_64 = arith.constant 24 : index
    %c0_65 = arith.constant 0 : index
    %68 = vector.load %arg2[%c24_64, %c0_65] : memref<72x256xf32, #tpu.memory_space<vmem>>, vector<4x256xf32>
    %69 = arith.mulf %67, %68 : vector<4x256xf32>
    %c24_66 = arith.constant 24 : index
    %c0_67 = arith.constant 0 : index
    %70 = vector.load %arg6[%c24_66, %c0_67] : memref<72x256xf32, #tpu.memory_space<vmem>>, vector<4x256xf32>
    tpu.vector_store %arg6[%c24_66, %c0_67], %69 {strides = array<i32>} : memref<72x256xf32, #tpu.memory_space<vmem>>, vector<4x256xf32>,
    %c32_68 = arith.constant 32 : index
    %c0_69 = arith.constant 0 : index
    %71 = vector.load %arg6[%c32_68, %c0_69] : memref<72x256xf32, #tpu.memory_space<vmem>>, vector<4x256xf32>
    tpu.vector_store %arg6[%c32_68, %c0_69], %54 {strides = array<i32>} : memref<72x256xf32, #tpu.memory_space<vmem>>, vector<4x256xf32>,
    %c255_i32_70 = arith.constant 255 : i32
    %72 = tpu.dynamic_rotate %54 by %c255_i32_70 dim 1 : vector<4x256xf32>, i32 -> vector<4x256xf32>
    %c40_71 = arith.constant 40 : index
    %c0_72 = arith.constant 0 : index
    %73 = vector.load %arg2[%c40_71, %c0_72] : memref<72x256xf32, #tpu.memory_space<vmem>>, vector<4x256xf32>
    %74 = arith.mulf %72, %73 : vector<4x256xf32>
    %c40_73 = arith.constant 40 : index
    %c0_74 = arith.constant 0 : index
    %75 = vector.load %arg6[%c40_73, %c0_74] : memref<72x256xf32, #tpu.memory_space<vmem>>, vector<4x256xf32>
    tpu.vector_store %arg6[%c40_73, %c0_74], %74 {strides = array<i32>} : memref<72x256xf32, #tpu.memory_space<vmem>>, vector<4x256xf32>,
    %c241_i32_75 = arith.constant 241 : i32
    %76 = tpu.dynamic_rotate %54 by %c241_i32_75 dim 1 : vector<4x256xf32>, i32 -> vector<4x256xf32>
    %c48_76 = arith.constant 48 : index
    %c0_77 = arith.constant 0 : index
    %77 = vector.load %arg2[%c48_76, %c0_77] : memref<72x256xf32, #tpu.memory_space<vmem>>, vector<4x256xf32>
    %78 = arith.mulf %76, %77 : vector<4x256xf32>
    %c48_78 = arith.constant 48 : index
    %c0_79 = arith.constant 0 : index
    %79 = vector.load %arg6[%c48_78, %c0_79] : memref<72x256xf32, #tpu.memory_space<vmem>>, vector<4x256xf32>
    tpu.vector_store %arg6[%c48_78, %c0_79], %78 {strides = array<i32>} : memref<72x256xf32, #tpu.memory_space<vmem>>, vector<4x256xf32>,
    %c240_i32_80 = arith.constant 240 : i32
    %80 = tpu.dynamic_rotate %54 by %c240_i32_80 dim 1 : vector<4x256xf32>, i32 -> vector<4x256xf32>
    %c56_81 = arith.constant 56 : index
    %c0_82 = arith.constant 0 : index
    %81 = vector.load %arg2[%c56_81, %c0_82] : memref<72x256xf32, #tpu.memory_space<vmem>>, vector<4x256xf32>
    %82 = arith.mulf %80, %81 : vector<4x256xf32>
    %c56_83 = arith.constant 56 : index
    %c0_84 = arith.constant 0 : index
    %83 = vector.load %arg6[%c56_83, %c0_84] : memref<72x256xf32, #tpu.memory_space<vmem>>, vector<4x256xf32>
    tpu.vector_store %arg6[%c56_83, %c0_84], %82 {strides = array<i32>} : memref<72x256xf32, #tpu.memory_space<vmem>>, vector<4x256xf32>,
    %c239_i32_85 = arith.constant 239 : i32
    %84 = tpu.dynamic_rotate %54 by %c239_i32_85 dim 1 : vector<4x256xf32>, i32 -> vector<4x256xf32>
    %c64_86 = arith.constant 64 : index
    %c0_87 = arith.constant 0 : index
    %85 = vector.load %arg2[%c64_86, %c0_87] : memref<72x256xf32, #tpu.memory_space<vmem>>, vector<4x256xf32>
    %86 = arith.mulf %84, %85 : vector<4x256xf32>
    %c64_88 = arith.constant 64 : index
    %c0_89 = arith.constant 0 : index
    %87 = vector.load %arg6[%c64_88, %c0_89] : memref<72x256xf32, #tpu.memory_space<vmem>>, vector<4x256xf32>
    tpu.vector_store %arg6[%c64_88, %c0_89], %86 {strides = array<i32>} : memref<72x256xf32, #tpu.memory_space<vmem>>, vector<4x256xf32>,
    %c0_90 = arith.constant 0 : index
    %c0_91 = arith.constant 0 : index
    %88 = vector.load %arg6[%c0_90, %c0_91] : memref<72x256xf32, #tpu.memory_space<vmem>>, vector<72x256xf32>
    %cst_92 = arith.constant dense<0.000000e+00> : vector<8x256xf32>
    %89 = tpu.matmul %50, %88, %cst_92 {dimension_numbers = #tpu.dot_dimension_numbers<[1], [0], [0], [1], [0, 0, 1, 1], [], []>} : vector<8x72xf32>, vector<72x256xf32>, vector<8x256xf32> -> vector<8x256xf32>
    %cst_93 = arith.constant 0.000000e+00 : f32
    %90 = vector.broadcast %cst_93 : f32 to vector<8x256xf32>
    %91 = arith.maximumf %89, %90 : vector<8x256xf32>
    %cst_94 = arith.constant dense<0.000000e+00> : vector<4x256xf32>
    %92 = tpu.matmul %52, %91, %cst_94 {dimension_numbers = #tpu.dot_dimension_numbers<[1], [0], [0], [1], [0, 0, 1, 1], [], []>} : vector<4x8xf32>, vector<8x256xf32>, vector<4x256xf32> -> vector<4x256xf32>
    %93 = arith.addf %48, %92 : vector<4x256xf32>
    %cst_95 = arith.constant 0.000000e+00 : f32
    %94 = vector.broadcast %cst_95 : f32 to vector<4x256xf32>
    %95 = arith.maximumf %93, %94 : vector<4x256xf32>
    %c0_96 = arith.constant 0 : index
    %c0_97 = arith.constant 0 : index
    %c0_98 = arith.constant 0 : index
    %96 = vector.load %arg5[%c0_96, %c0_97, %c0_98] : memref<1x4x256xf32, #tpu.memory_space<vmem>>, vector<1x4x256xf32>
    %97 = vector.shape_cast %96 : vector<1x4x256xf32> to vector<4x256xf32>
    %98 = vector.shape_cast %95 : vector<4x256xf32> to vector<1x4x256xf32>
    tpu.vector_store %arg5[%c0_96, %c0_97, %c0_98], %98 {strides = array<i32>} : memref<1x4x256xf32, #tpu.memory_space<vmem>>, vector<1x4x256xf32>,
    return
  }
  func.func @transform_0(%arg0: i32) -> (i32, i32, i32) {
    %c0_i32 = arith.constant 0 : i32
    %c0_i32_0 = arith.constant 0 : i32
    %c0_i32_1 = arith.constant 0 : i32
    return %arg0, %c0_i32, %c0_i32_0 : i32, i32, i32
  }
  func.func @transform_1(%arg0: i32) -> (i32, i32) {
    %c0_i32 = arith.constant 0 : i32
    %c0_i32_0 = arith.constant 0 : i32
    %c0_i32_1 = arith.constant 0 : i32
    return %c0_i32, %c0_i32_0 : i32, i32
  }
  func.func @transform_2(%arg0: i32) -> (i32, i32, i32) {
    %c0_i32 = arith.constant 0 : i32
    %c0_i32_0 = arith.constant 0 : i32
    %c0_i32_1 = arith.constant 0 : i32
    %c0_i32_2 = arith.constant 0 : i32
    return %c0_i32, %c0_i32_0, %c0_i32_1 : i32, i32, i32
  }
  func.func @transform_3(%arg0: i32) -> (i32, i32, i32) {
    %c0_i32 = arith.constant 0 : i32
    %c0_i32_0 = arith.constant 0 : i32
    %c0_i32_1 = arith.constant 0 : i32
    %c0_i32_2 = arith.constant 0 : i32
    return %c0_i32, %c0_i32_0, %c0_i32_1 : i32, i32, i32
  }
  func.func @transform_4(%arg0: i32) -> (i32, i32, i32) {
    %c0_i32 = arith.constant 0 : i32
    %c0_i32_0 = arith.constant 0 : i32
    %c0_i32_1 = arith.constant 0 : i32
    return %arg0, %c0_i32, %c0_i32_0 : i32, i32, i32
  }
}

</mosaic_0001>

<llo_original>
// kernel: tpu_custom_call.1
$region0: #{tpu_custom_call.1}
  #allocation0 [shape = 'u32[]', space=smem, size = 0x4, offset = 0x4, fixed_abs, tag = 'smem constant byte address 0x4 - core index']
  #allocation1 [shape = 'u32[144,128]{1,0:T(1,128)}', space=vmem, size = 0x12000, scoped, tag = 'internal scratch']
  #allocation2 [shape = 'f32[72,256]{1,0:T(8,128)}', space=vmem, size = 0x12000, scoped, tag = 'scratch operand']
  %s0 = inlined_call_operand.hbm [shape: f32[2,4,256], index: 0, kind: input, shape index: {}]
  %s1 = inlined_call_operand.hbm [shape: f32[72,256], index: 1, kind: input, shape index: {}]
  %s2 = inlined_call_operand.hbm [shape: f32[2,8,72], index: 2, kind: input, shape index: {}]
  %s3 = inlined_call_operand.vmem [shape: f32[2,4,8], index: 3, kind: input, shape index: {}]
  %s4 = inlined_call_operand.hbm [shape: f32[2,4,256], index: 4, kind: output, shape index: {}]
  %s5 = sld [smem:[#allocation0]]
  $region61: #{tpu_custom_call.1} parent=0
    _
  %s7 = ssub.s32 1, %s5
  %s8 = scalar_select 0, %s7, %s5
  $region1: #{tpu_custom_call.1} parent=0
    #allocation3 [shape = 'u8[8192]{0}', space=vmem, size = 0x2000, scoped, tag = 'input window, operand 0']
    #allocation4 [shape = 's32[2]{0}', space=sflag, size = 0x8, scoped, tag = 'scoped memory for tpu_custom_call.1']
    #allocation5 [shape = 's32[2]{0}', space=sflag, size = 0x8, scoped, tag = 'scoped memory for tpu_custom_call.1']
    #allocation6 [shape = 'u8[73728]{0}', space=vmem, size = 0x12000, scoped, tag = 'input window, operand 1, single buffered']
    #allocation7 [shape = 's32[1]{0}', space=sflag, size = 0x4, scoped, tag = 'scoped memory for tpu_custom_call.1']
    #allocation8 [shape = 'u8[8192]{0}', space=vmem, size = 0x2000, scoped, tag = 'input window, operand 2, single buffered']
    #allocation9 [shape = 'u8[8192]{0}', space=vmem, size = 0x2000, scoped, tag = 'output window, operand 0']
    %9 = vsyncpa [#allocation4], 0
    %s10 = scalar_lea.sflag [#allocation4], 1
    %11 = vsyncpa %s10, 0
    %12 = vsyncpa [#allocation7], 0
    %13 = vsyncpa [#allocation5], 0
    %s14 = scalar_lea.sflag [#allocation5], 1
    %15 = vsyncpa %s14, 0
    loop: start=0, step=1, limit=4
    $region2: #{tpu_custom_call.1} parent=1 // loop_pre_header
      _
    $region3: #{tpu_custom_call.1} parent=1 // loop_header
      %s17 = sphi 0, %s21
      %p18 = scmp.ge.s32.totalorder %s17, 4
      %s27 = sphi 0, %s29
      %s30 = sphi 0, %s27
      %s31 = sphi 0, %s30
      %s47 = sphi 0, %s31
      %s51 = sphi 0, %s51
      %s53 = sphi 0, %s51
      %s54 = sphi 0, %s53
      %s68 = sphi 0, %s54
      %s72 = sphi 0, %s72
      %s74 = sphi 0, %s72
      %s75 = sphi 0, %s74
      %s89 = sphi 0, %s75
      %s93 = sphi 0, %s93
      %s95 = sphi 0, %s93
      %s96 = sphi 0, %s95
      %s110 = sphi 0, %s96
      %s116 = sphi 0, %s118
      %s119 = sphi 0, %s116
      %s120 = sphi 0, %s119
      %s136 = sphi 0, %s120
    $region4: #{tpu_custom_call.1} parent=1 // loop_header_branch
      %20 = sbr.rel (%p18) target = $region8
    $region5: #{tpu_custom_call.1} parent=1 // loop_body
      %s22 = ssub.s32 %s17, 1
      %s23 = ssub.s32 %s17, 2
      %s24 = sadd.s32 %s17, 1
      %s25 = ssub.s32 %s17, %s24
      %p26 = scmp.eq.s32.totalorder %s25, 0
      %s28 = sadd.s32 %s27, 1
      %s29 = scalar_select %p26, %s27, %s28
      %p32 = pneg %p26
      %p33 = scmp.eq.s32.totalorder %s17, 1
      %p34 = por %p32, %p33
      %p35 = scmp.ne.s32.totalorder %s27, %s30
      %p36 = scmp.eq.s32.totalorder %s17, 0
      %p37 = por %p35, %p36
      %p38 = scmp.ne.s32.totalorder %s27, %s30
      %p39 = scmp.eq.s32.totalorder %s22, 1
      %p40 = por %p38, %p39
      %p41 = scmp.ne.s32.totalorder %s30, %s31
      %p42 = scmp.eq.s32.totalorder %s22, 0
      %p43 = por %p41, %p42
      %p44 = scmp.ne.s32.totalorder %s30, %s31
      %p45 = scmp.eq.s32.totalorder %s23, 1
      %p46 = por %p44, %p45
      %p48 = scmp.ne.s32.totalorder %s31, %s47
      %p49 = scmp.eq.s32.totalorder %s23, 0
      %p50 = por %p48, %p49
      %s52 = sadd.s32 %s51, 1
      %p55 = scmp.eq.s32.totalorder %s17, 1
      %p56 = scmp.ne.s32.totalorder %s51, %s53
      %p57 = scmp.eq.s32.totalorder %s17, 0
      %p58 = por %p56, %p57
      %p59 = scmp.ne.s32.totalorder %s51, %s53
      %p60 = scmp.eq.s32.totalorder %s22, 1
      %p61 = por %p59, %p60
      %p62 = scmp.ne.s32.totalorder %s53, %s54
      %p63 = scmp.eq.s32.totalorder %s22, 0
      %p64 = por %p62, %p63
      %p65 = scmp.ne.s32.totalorder %s53, %s54
      %p66 = scmp.eq.s32.totalorder %s23, 1
      %p67 = por %p65, %p66
      %p69 = scmp.ne.s32.totalorder %s54, %s68
      %p70 = scmp.eq.s32.totalorder %s23, 0
      %p71 = por %p69, %p70
      %s73 = sadd.s32 %s72, 1
      %p76 = scmp.eq.s32.totalorder %s17, 1
      %p77 = scmp.ne.s32.totalorder %s72, %s74
      %p78 = scmp.eq.s32.totalorder %s17, 0
      %p79 = por %p77, %p78
      %p80 = scmp.ne.s32.totalorder %s72, %s74
      %p81 = scmp.eq.s32.totalorder %s22, 1
      %p82 = por %p80, %p81
      %p83 = scmp.ne.s32.totalorder %s74, %s75
      %p84 = scmp.eq.s32.totalorder %s22, 0
      %p85 = por %p83, %p84
      %p86 = scmp.ne.s32.totalorder %s74, %s75
      %p87 = scmp.eq.s32.totalorder %s23, 1
      %p88 = por %p86, %p87
      %p90 = scmp.ne.s32.totalorder %s75, %s89
      %p91 = scmp.eq.s32.totalorder %s23, 0
      %p92 = por %p90, %p91
      %s94 = sadd.s32 %s93, 1
      %p97 = scmp.eq.s32.totalorder %s17, 1
      %p98 = scmp.ne.s32.totalorder %s93, %s95
      %p99 = scmp.eq.s32.totalorder %s17, 0
      %p100 = por %p98, %p99
      %p101 = scmp.ne.s32.totalorder %s93, %s95
      %p102 = scmp.eq.s32.totalorder %s22, 1
      %p103 = por %p101, %p102
      %p104 = scmp.ne.s32.totalorder %s95, %s96
      %p105 = scmp.eq.s32.totalorder %s22, 0
      %p106 = por %p104, %p105
      %p107 = scmp.ne.s32.totalorder %s95, %s96
      %p108 = scmp.eq.s32.totalorder %s23, 1
      %p109 = por %p107, %p108
      %p111 = scmp.ne.s32.totalorder %s96, %s110
      %p112 = scmp.eq.s32.totalorder %s23, 0
      %p113 = por %p111, %p112
      %s114 = ssub.s32 %s17, %s24
      %p115 = scmp.eq.s32.totalorder %s114, 0
      %s117 = sadd.s32 %s116, 1
      %s118 = scalar_select %p115, %s116, %s117
      %p121 = pneg %p115
      %p122 = scmp.eq.s32.totalorder %s17, 1
      %p123 = por %p121, %p122
      %p124 = scmp.ne.s32.totalorder %s116, %s119
      %p125 = scmp.eq.s32.totalorder %s17, 0
      %p126 = por %p124, %p125
      %p127 = scmp.ne.s32.totalorder %s116, %s119
      %p128 = scmp.eq.s32.totalorder %s22, 1
      %p129 = por %p127, %p128
      %p130 = scmp.ne.s32.totalorder %s119, %s120
      %p131 = scmp.eq.s32.totalorder %s22, 0
      %p132 = por %p130, %p131
      %p133 = scmp.ne.s32.totalorder %s119, %s120
      %p134 = scmp.eq.s32.totalorder %s23, 1
      %p135 = por %p133, %p134
      %p137 = scmp.ne.s32.totalorder %s120, %s136
      %p138 = scmp.eq.s32.totalorder %s23, 0
      %p139 = por %p137, %p138
      %p140 = scmp.le.s32.totalorder 1, %s17
      %p141 = scmp.lt.s32.totalorder %s17, 3
      %p142 = pnand %p140, %p141
      %p143 = pneg %p142
      // Predicated region
      $region9: #{tpu_custom_call.1} parent=5 // pred_check
        _
      $region10: #{tpu_custom_call.1} parent=5 // pred_check_branch
        %145 = sbr.rel (%p142) target = $region12
      $region11: #{tpu_custom_call.1} parent=5 // pred_region
        %s146 = ssub.s32 %s17, 1
        // Predicated region
        $region13: #{tpu_custom_call.1} parent=11 // pred_check
          %p147 = pneg %p64
        $region14: #{tpu_custom_call.1} parent=11 // pred_check_branch
          %149 = sbr.rel (%p147) target = $region16
        $region15: #{tpu_custom_call.1} parent=11 // pred_region
          %s151 = ssub.s32 2304, 2304
          %152 = vsyncadd [#allocation7], %s151
          %s153 = sshll.u32 [#allocation6], 4
          %s154 = int_to_ptr.vmem [resolvable:$true] %s153
          %159 = dma.hbm_to_vmem [thread:$0]  %s1, 2304, %s154, [#allocation7], 256, 256, 16
        $region16: #{tpu_custom_call.1} parent=11 // pred_fallthru
          _
        // Predicated region
        $region17: #{tpu_custom_call.1} parent=11 // pred_check
          %p160 = pneg %p85
        $region18: #{tpu_custom_call.1} parent=11 // pred_check_branch
          %162 = sbr.rel (%p160) target = $region20
        $region19: #{tpu_custom_call.1} parent=11 // pred_region
          %s164 = ssub.s32 256, 256
          %165 = vsyncadd [#allocation7], %s164
          %s166 = sshll.u32 [#allocation8], 4
          %s167 = int_to_ptr.vmem [resolvable:$true] %s166
          %172 = dma.hbm_to_vmem [thread:$0]  %s2, 256, %s167, [#allocation7], 128, 128, 8
        $region20: #{tpu_custom_call.1} parent=11 // pred_fallthru
          _
        // Predicated region
        $region21: #{tpu_custom_call.1} parent=11 // pred_check
          %p173 = pneg %p106
        $region22: #{tpu_custom_call.1} parent=11 // pred_check_branch
          %175 = sbr.rel (%p173) target = $region24
        $region23: #{tpu_custom_call.1} parent=11 // pred_region
          _
        $region24: #{tpu_custom_call.1} parent=11 // pred_fallthru
          _
      $region12: #{tpu_custom_call.1} parent=5 // pred_fallthru
        _
      %p176 = scmp.lt.s32.totalorder %s17, 2
      // Predicated region
      $region25: #{tpu_custom_call.1} parent=5 // pred_check
        %p177 = pneg %p176
      $region26: #{tpu_custom_call.1} parent=5 // pred_check_branch
        %179 = sbr.rel (%p177) target = $region28
      $region27: #{tpu_custom_call.1} parent=5 // pred_region
        // Predicated region
        $region29: #{tpu_custom_call.1} parent=27 // pred_check
          %p180 = pneg %p37
        $region30: #{tpu_custom_call.1} parent=27 // pred_check_branch
          %182 = sbr.rel (%p180) target = $region32
        $region31: #{tpu_custom_call.1} parent=27 // pred_region
          %s183 = sand.u32 %s27, 1
          %s184 = scalar_lea.sflag [#allocation4], %s183
          %s185 = sand.u32 %s27, 1
          %s186 = smul.addr %s185, 8
          %s187 = scalar_lea.vmem [#allocation3], %s186
          %s189 = ssub.s32 128, 128
          %190 = vsyncadd %s184, %s189
          %s191 = smul.addr %s17, 2
          %s192 = smul.addr %s191, 64
          %s193 = scalar_lea.hbm %s0, %s192
          %s195 = sshll.u32 %s187, 4
          %s196 = int_to_ptr.vmem [resolvable:$true] %s195
          %198 = dma.hbm_to_vmem [thread:$0]  %s193, 128, %s196, %s184
        $region32: #{tpu_custom_call.1} parent=27 // pred_fallthru
          _
      $region28: #{tpu_custom_call.1} parent=5 // pred_fallthru
        _
      %p199 = scmp.le.s32.totalorder 1, %s17
      %p200 = scmp.lt.s32.totalorder %s17, 3
      %p201 = pnand %p199, %p200
      %p202 = pneg %p201
      // Predicated region
      $region33: #{tpu_custom_call.1} parent=5 // pred_check
        _
      $region34: #{tpu_custom_call.1} parent=5 // pred_check_branch
        %204 = sbr.rel (%p201) target = $region36
      $region35: #{tpu_custom_call.1} parent=5 // pred_region
        %s205 = ssub.s32 %s17, 1
        %s206 = sand.u32 %s30, 1
        %s207 = scalar_lea.sflag [#allocation4], %s206
        %s208 = sand.u32 %s30, 1
        %s209 = smul.addr %s208, 8
        %s210 = scalar_lea.vmem [#allocation3], %s209
        // Predicated region
        $region37: #{tpu_custom_call.1} parent=35 // pred_check
          %p211 = pneg %p43
        $region38: #{tpu_custom_call.1} parent=35 // pred_check_branch
          %213 = sbr.rel (%p211) target = $region40
        $region39: #{tpu_custom_call.1} parent=35 // pred_region
          %214 = dma.done %s207, 128
        $region40: #{tpu_custom_call.1} parent=35 // pred_fallthru
          _
        // Predicated region
        $region41: #{tpu_custom_call.1} parent=35 // pred_check
          %p215 = pneg %p64
        $region42: #{tpu_custom_call.1} parent=35 // pred_check_branch
          %217 = sbr.rel (%p215) target = $region44
        $region43: #{tpu_custom_call.1} parent=35 // pred_region
          %218 = dma.done [#allocation7], 2304
        $region44: #{tpu_custom_call.1} parent=35 // pred_fallthru
          _
        // Predicated region
        $region45: #{tpu_custom_call.1} parent=35 // pred_check
          %p219 = pneg %p85
        $region46: #{tpu_custom_call.1} parent=35 // pred_check_branch
          %221 = sbr.rel (%p219) target = $region48
        $region47: #{tpu_custom_call.1} parent=35 // pred_region
          %222 = dma.done [#allocation7], 256
        $region48: #{tpu_custom_call.1} parent=35 // pred_fallthru
          _
        %s223 = sand.u32 %s30, 1
        %s224 = scalar_lea.sflag [#allocation4], %s223
        %s225 = sand.u32 %s30, 1
        %s226 = smul.addr %s225, 8
        %s227 = scalar_lea.vmem [#allocation3], %s226
        %p228 = pneg %p43
        %p229 = pneg %p40
        %p230 = pneg %p64
        %p231 = pneg %p61
        %p232 = pneg %p85
        %p233 = pneg %p82
        %p234 = pneg %p106
        %p235 = pneg %p103
        %p236 = pneg %p132
        %p237 = pneg %p129
        %s238 = sand.u32 %s119, 1
        %s239 = scalar_lea.sflag [#allocation5], %s238
        %s240 = sand.u32 %s119, 1
        %s241 = smul.addr %s240, 8
        %s242 = scalar_lea.vmem [#allocation9], %s241
        %243 = vst [vmem:[#allocation2] sm:$0xff] 0.0
        %244 = vst [vmem:[#allocation2 + $0x8] sm:$0xff] 0.0
        %245 = vst [vmem:[#allocation2 + $0x10] sm:$0xff] 0.0
        %246 = vst [vmem:[#allocation2 + $0x18] sm:$0xff] 0.0
        %247 = vst [vmem:[#allocation2 + $0x20] sm:$0xff] 0.0
        %248 = vst [vmem:[#allocation2 + $0x28] sm:$0xff] 0.0
        %249 = vst [vmem:[#allocation2 + $0x30] sm:$0xff] 0.0
        %250 = vst [vmem:[#allocation2 + $0x38] sm:$0xff] 0.0
        %251 = vst [vmem:[#allocation2 + $0x40] sm:$0xff] 0.0
        %252 = vst [vmem:[#allocation2 + $0x48] sm:$0xff] 0.0
        %253 = vst [vmem:[#allocation2 + $0x50] sm:$0xff] 0.0
        %254 = vst [vmem:[#allocation2 + $0x58] sm:$0xff] 0.0
        %255 = vst [vmem:[#allocation2 + $0x60] sm:$0xff] 0.0
        %256 = vst [vmem:[#allocation2 + $0x68] sm:$0xff] 0.0
        %257 = vst [vmem:[#allocation2 + $0x70] sm:$0xff] 0.0
        %258 = vst [vmem:[#allocation2 + $0x78] sm:$0xff] 0.0
        %259 = vst [vmem:[#allocation2 + $0x80] sm:$0xff] 0.0
        %260 = vst [vmem:[#allocation2 + $0x88] sm:$0xff] 0.0
        %v261 = vld [vmem:[%s210] sm:$0xff]
        %v262 = vld [vmem:[#allocation8] sm:$0xff]
        %v263 = vld [vmem:[%s3] sm:$0xf]
        %v264 = vmax.f32 %v261, 0.0
        %v266 = vcombine.high %v264, %v264
        %268 = vrot.lane.b32.xlu0 %v264, 17
        %v269 = vpop.permute.xlu0 %268
        %270 = vrot.lane.b32.xlu0 %v266, 17
        %v271 = vpop.permute.xlu0 %270
        %v272 = vlaneseq
        %v273 = vand.u32 %v272, 127
        %vm274 = vcmp.lt.s32.totalorder %v273, 17
        %v275 = vsel %vm274, %v269, %v271
        %v276 = vsel %vm274, %v271, %v269
        %v277 = vld [vmem:[#allocation6] sm:$0xf]
        %v278 = vld [vmem:[#allocation6 + $0x8] sm:$0xf]
        %v279 = vmul.f32 %v276, %v277
        %v280 = vmul.f32 %v275, %v278
        %281 = vst [vmem:[#allocation2] sm:$0xf] %v279
        %282 = vst [vmem:[#allocation2 + $0x8] sm:$0xf] %v280
        %283 = vrot.lane.b32.xlu0 %v264, 16
        %v284 = vpop.permute.xlu0 %283
        %285 = vrot.lane.b32.xlu0 %v266, 16
        %v286 = vpop.permute.xlu0 %285
        %vm287 = vcmp.lt.s32.totalorder %v273, 16
        %v288 = vsel %vm287, %v284, %v286
        %v289 = vsel %vm287, %v286, %v284
        %v290 = vld [vmem:[#allocation6 + $0x10] sm:$0xf]
        %v291 = vld [vmem:[#allocation6 + $0x18] sm:$0xf]
        %v292 = vmul.f32 %v289, %v290
        %v293 = vmul.f32 %v288, %v291
        %294 = vst [vmem:[#allocation2 + $0x10] sm:$0xf] %v292
        %295 = vst [vmem:[#allocation2 + $0x18] sm:$0xf] %v293
        %296 = vrot.lane.b32.xlu0 %v264, 15
        %v297 = vpop.permute.xlu0 %296
        %298 = vrot.lane.b32.xlu0 %v266, 15
        %v299 = vpop.permute.xlu0 %298
        %vm300 = vcmp.lt.s32.totalorder %v273, 15
        %v301 = vsel %vm300, %v297, %v299
        %v302 = vsel %vm300, %v299, %v297
        %v303 = vld [vmem:[#allocation6 + $0x20] sm:$0xf]
        %v304 = vld [vmem:[#allocation6 + $0x28] sm:$0xf]
        %v305 = vmul.f32 %v302, %v303
        %v306 = vmul.f32 %v301, %v304
        %307 = vst [vmem:[#allocation2 + $0x20] sm:$0xf] %v305
        %308 = vst [vmem:[#allocation2 + $0x28] sm:$0xf] %v306
        %309 = vrot.lane.b32.xlu0 %v264, 1
        %v310 = vpop.permute.xlu0 %309
        %311 = vrot.lane.b32.xlu0 %v266, 1
        %v312 = vpop.permute.xlu0 %311
        %vm313 = vcmp.lt.s32.totalorder %v273, 1
        %v314 = vsel %vm313, %v310, %v312
        %v315 = vsel %vm313, %v312, %v310
        %v316 = vld [vmem:[#allocation6 + $0x30] sm:$0xf]
        %v317 = vld [vmem:[#allocation6 + $0x38] sm:$0xf]
        %v318 = vmul.f32 %v315, %v316
        %v319 = vmul.f32 %v314, %v317
        %320 = vst [vmem:[#allocation2 + $0x30] sm:$0xf] %v318
        %321 = vst [vmem:[#allocation2 + $0x38] sm:$0xf] %v319
        %322 = vst [vmem:[#allocation2 + $0x40] sm:$0xf] %v264
        %323 = vst [vmem:[#allocation2 + $0x48] sm:$0xf] %v266
        %324 = vrot.lane.b32.xlu0 %v264, 127
        %v325 = vpop.permute.xlu0 %324
        %326 = vrot.lane.b32.xlu0 %v266, 127
        %v327 = vpop.permute.xlu0 %326
        %vm328 = vcmp.lt.s32.totalorder %v273, 127
        %v329 = vsel %vm328, %v325, %v327
        %v330 = vsel %vm328, %v327, %v325
        %v331 = vld [vmem:[#allocation6 + $0x50] sm:$0xf]
        %v332 = vld [vmem:[#allocation6 + $0x58] sm:$0xf]
        %v333 = vmul.f32 %v329, %v331
        %v334 = vmul.f32 %v330, %v332
        %335 = vst [vmem:[#allocation2 + $0x50] sm:$0xf] %v333
        %336 = vst [vmem:[#allocation2 + $0x58] sm:$0xf] %v334
        %337 = vrot.lane.b32.xlu0 %v264, 113
        %v338 = vpop.permute.xlu0 %337
        %339 = vrot.lane.b32.xlu0 %v266, 113
        %v340 = vpop.permute.xlu0 %339
        %vm341 = vcmp.lt.s32.totalorder %v273, 113
        %v342 = vsel %vm341, %v338, %v340
        %v343 = vsel %vm341, %v340, %v338
        %v344 = vld [vmem:[#allocation6 + $0x60] sm:$0xf]
        %v345 = vld [vmem:[#allocation6 + $0x68] sm:$0xf]
        %v346 = vmul.f32 %v342, %v344
        %v347 = vmul.f32 %v343, %v345
        %348 = vst [vmem:[#allocation2 + $0x60] sm:$0xf] %v346
        %349 = vst [vmem:[#allocation2 + $0x68] sm:$0xf] %v347
        %350 = vrot.lane.b32.xlu0 %v264, 112
        %v351 = vpop.permute.xlu0 %350
        %352 = vrot.lane.b32.xlu0 %v266, 112
        %v353 = vpop.permute.xlu0 %352
        %vm354 = vcmp.lt.s32.totalorder %v273, 112
        %v355 = vsel %vm354, %v351, %v353
        %v356 = vsel %vm354, %v353, %v351
        %v357 = vld [vmem:[#allocation6 + $0x70] sm:$0xf]
        %v358 = vld [vmem:[#allocation6 + $0x78] sm:$0xf]
        %v359 = vmul.f32 %v355, %v357
        %v360 = vmul.f32 %v356, %v358
        %361 = vst [vmem:[#allocation2 + $0x70] sm:$0xf] %v359
        %362 = vst [vmem:[#allocation2 + $0x78] sm:$0xf] %v360
        %363 = vrot.lane.b32.xlu0 %v264, 111
        %v364 = vpop.permute.xlu0 %363
        %365 = vrot.lane.b32.xlu0 %v266, 111
        %v366 = vpop.permute.xlu0 %365
        %vm367 = vcmp.lt.s32.totalorder %v273, 111
        %v368 = vsel %vm367, %v364, %v366
        %v369 = vsel %vm367, %v366, %v364
        %v370 = vld [vmem:[#allocation6 + $0x80] sm:$0xf]
        %v371 = vld [vmem:[#allocation6 + $0x88] sm:$0xf]
        %v372 = vmul.f32 %v368, %v370
        %v373 = vmul.f32 %v369, %v371
        %374 = vst [vmem:[#allocation2 + $0x80] sm:$0xf] %v372
        %375 = vst [vmem:[#allocation2 + $0x88] sm:$0xf] %v373
        %v376 = vld [vmem:[#allocation2] sm:$0xff]
        %v377 = vld [vmem:[#allocation2 + $0x8] sm:$0xff]
        %v378 = vld [vmem:[#allocation2 + $0x10] sm:$0xff]
        %v379 = vld [vmem:[#allocation2 + $0x18] sm:$0xff]
        %v380 = vld [vmem:[#allocation2 + $0x20] sm:$0xff]
        %v381 = vld [vmem:[#allocation2 + $0x28] sm:$0xff]
        %v382 = vld [vmem:[#allocation2 + $0x30] sm:$0xff]
        %v383 = vld [vmem:[#allocation2 + $0x38] sm:$0xff]
        %v384 = vld [vmem:[#allocation2 + $0x40] sm:$0xff]
        %v385 = vld [vmem:[#allocation2 + $0x48] sm:$0xff]
        %v386 = vld [vmem:[#allocation2 + $0x50] sm:$0xff]
        %v387 = vld [vmem:[#allocation2 + $0x58] sm:$0xff]
        %v388 = vld [vmem:[#allocation2 + $0x60] sm:$0xff]
        %v389 = vld [vmem:[#allocation2 + $0x68] sm:$0xff]
        %v390 = vld [vmem:[#allocation2 + $0x70] sm:$0xff]
        %v391 = vld [vmem:[#allocation2 + $0x78] sm:$0xff]
        %v392 = vld [vmem:[#allocation2 + $0x80] sm:$0xff]
        %v393 = vld [vmem:[#allocation2 + $0x88] sm:$0xff]
        %vm394 = vcmask 588800
        %v396 = vsel %vm394, %v262, 0
        %398 = vmatprep.subr.mxu0 %v377
        %399 = vmatpush1.msra.mxu0 %v376
        %400 = vmatprep.subr.mxu0 %v379
        %401 = vmatpush1.msra.mxu0 %v378
        %402 = vmatprep.subr.mxu0 %v381
        %403 = vmatpush1.msra.mxu0 %v380
        %404 = vmatprep.subr.mxu0 %v383
        %405 = vmatpush1.msra.mxu0 %v382
        %406 = vmatprep.subr.mxu0 %v385
        %407 = vmatpush1.msra.mxu0 %v384
        %408 = vmatprep.subr.mxu0 %v387
        %409 = vmatpush1.msra.mxu0 %v386
        %410 = vmatprep.subr.mxu0 %v389
        %411 = vmatpush1.msra.mxu0 %v388
        %412 = vmatprep.subr.mxu0 %v391
        %413 = vmatpush1.msra.mxu0 %v390
        %414 = vmatprep.subr.mxu0 %v393
        %415 = vmatpush1.msra.mxu0 %v392
        %416 = vmatprep.subr.mxu0 0.0
        %417 = vmatpush1.msra.mxu0 0.0
        %418 = vmatprep.subr.mxu0 0.0
        %419 = vmatpush1.msra.mxu0 0.0
        %420 = vmatprep.subr.mxu0 0.0
        %421 = vmatpush1.msra.mxu0 0.0
        %422 = vmatprep.subr.mxu0 0.0
        %423 = vmatpush1.msra.mxu0 0.0
        %424 = vmatprep.subr.mxu0 0.0
        %425 = vmatpush1.msra.mxu0 0.0
        %426 = vmatprep.subr.mxu0 0.0
        %427 = vmatpush1.msra.mxu0 0.0
        %428 = vmatprep.subr.mxu0 0.0
        %429 = vmatpush1.msra.mxu0 0.0
        %430 = vmatprep.subr.mxu0 0.0
        %431 = vmatpush1.msra.mxu0 0.0
        %432 = vmatprep.subr.mxu0 0.0
        %433 = vmatpush1.msra.mxu0 0.0
        %434 = vmatprep.subr.mxu0 0.0
        %435 = vmatpush1.msra.mxu0 0.0
        %436 = vmatprep.subr.mxu0 0.0
        %437 = vmatpush1.msra.mxu0 0.0
        %438 = vmatprep.subr.mxu0 0.0
        %439 = vmatpush1.msra.mxu0 0.0
        %440 = vmatprep.subr.mxu0 0.0
        %441 = vmatpush1.msra.mxu0 0.0
        %442 = vmatprep.subr.mxu0 0.0
        %443 = vmatpush1.msra.mxu0 0.0
        %444 = vmatprep.subr.mxu0 0.0
        %445 = vmatpush1.msra.mxu0 0.0
        %446 = vmatprep.subr.mxu0 0.0
        %447 = vmatpush1.msra.mxu0 0.0
        %448 = vmatprep.subr.mxu0 0.0
        %449 = vmatpush1.msra.mxu0 0.0
        %450 = vmatprep.subr.mxu0 0.0
        %451 = vmatpush1.msra.mxu0 0.0
        %452 = vmatprep.subr.mxu0 0.0
        %453 = vmatpush1.msra.mxu0 0.0
        %454 = vmatprep.subr.mxu0 0.0
        %455 = vmatpush1.msra.mxu0 0.0
        %456 = vmatprep.subr.mxu0 0.0
        %457 = vmatpush1.msra.mxu0 0.0
        %458 = vmatprep.subr.mxu0 0.0
        %459 = vmatpush1.msra.mxu0 0.0
        %460 = vmatprep.subr.mxu0 0.0
        %461 = vmatpush1.msra.mxu0 0.0
        %462 = vmatprep.mubr.f32.mxu0 0.0
        %463 = vmatmul.mubr.f32.gmra.mrb[0].mxu0 %v396
        %v464 = vpop.f32.mrb[0].mxu0
        %v465 = vadd.f32 0.0, %v464
        %v466 = vpop.f32.mrb[0].mxu0
        %v467 = vadd.f32 0.0, %v466
        %468 = vdwg.mxu0
        %v469 = vmax.f32 %v465, 0.0
        %v470 = vmax.f32 %v467, 0.0
        %vm471 = vcmask 64512
        %v473 = vsel %vm471, %v263, 0
        %475 = vmatprep.subr.mxu0 %v470
        %476 = vmatpush1.msra.mxu0 %v469
        %477 = vmatprep.subr.mxu0 0.0
        %478 = vmatpush1.msra.mxu0 0.0
        %479 = vmatprep.subr.mxu0 0.0
        %480 = vmatpush1.msra.mxu0 0.0
        %481 = vmatprep.subr.mxu0 0.0
        %482 = vmatpush1.msra.mxu0 0.0
        %483 = vmatprep.subr.mxu0 0.0
        %484 = vmatpush1.msra.mxu0 0.0
        %485 = vmatprep.subr.mxu0 0.0
        %486 = vmatpush1.msra.mxu0 0.0
        %487 = vmatprep.subr.mxu0 0.0
        %488 = vmatpush1.msra.mxu0 0.0
        %489 = vmatprep.subr.mxu0 0.0
        %490 = vmatpush1.msra.mxu0 0.0
        %491 = vmatprep.subr.mxu0 0.0
        %492 = vmatpush1.msra.mxu0 0.0
        %493 = vmatprep.subr.mxu0 0.0
        %494 = vmatpush1.msra.mxu0 0.0
        %495 = vmatprep.subr.mxu0 0.0
        %496 = vmatpush1.msra.mxu0 0.0
        %497 = vmatprep.subr.mxu0 0.0
        %498 = vmatpush1.msra.mxu0 0.0
        %499 = vmatprep.subr.mxu0 0.0
        %500 = vmatpush1.msra.mxu0 0.0
        %501 = vmatprep.subr.mxu0 0.0
        %502 = vmatpush1.msra.mxu0 0.0
        %503 = vmatprep.subr.mxu0 0.0
        %504 = vmatpush1.msra.mxu0 0.0
        %505 = vmatprep.subr.mxu0 0.0
        %506 = vmatpush1.msra.mxu0 0.0
        %507 = vmatprep.subr.mxu0 0.0
        %508 = vmatpush1.msra.mxu0 0.0
        %509 = vmatprep.subr.mxu0 0.0
        %510 = vmatpush1.msra.mxu0 0.0
        %511 = vmatprep.subr.mxu0 0.0
        %512 = vmatpush1.msra.mxu0 0.0
        %513 = vmatprep.subr.mxu0 0.0
        %514 = vmatpush1.msra.mxu0 0.0
        %515 = vmatprep.subr.mxu0 0.0
        %516 = vmatpush1.msra.mxu0 0.0
        %517 = vmatprep.subr.mxu0 0.0
        %518 = vmatpush1.msra.mxu0 0.0
        %519 = vmatprep.subr.mxu0 0.0
        %520 = vmatpush1.msra.mxu0 0.0
        %521 = vmatprep.subr.mxu0 0.0
        %522 = vmatpush1.msra.mxu0 0.0
        %523 = vmatprep.subr.mxu0 0.0
        %524 = vmatpush1.msra.mxu0 0.0
        %525 = vmatprep.subr.mxu0 0.0
        %526 = vmatpush1.msra.mxu0 0.0
        %527 = vmatprep.subr.mxu0 0.0
        %528 = vmatpush1.msra.mxu0 0.0
        %529 = vmatprep.subr.mxu0 0.0
        %530 = vmatpush1.msra.mxu0 0.0
        %531 = vmatprep.subr.mxu0 0.0
        %532 = vmatpush1.msra.mxu0 0.0
        %533 = vmatprep.subr.mxu0 0.0
        %534 = vmatpush1.msra.mxu0 0.0
        %535 = vmatprep.subr.mxu0 0.0
        %536 = vmatpush1.msra.mxu0 0.0
        %537 = vmatprep.subr.mxu0 0.0
        %538 = vmatpush1.msra.mxu0 0.0
        %539 = vmatprep.mubr.f32.mxu0 0.0
        %540 = vmatmul.mubr.f32.gmra.mrb[0].mxu0 %v473
        %v541 = vpop.f32.mrb[0].mxu0
        %v542 = vadd.f32 0.0, %v541
        %v543 = vpop.f32.mrb[0].mxu0
        %v544 = vadd.f32 0.0, %v543
        %545 = vdwg.mxu0
        %v548 = vcombine.low %v542, %v544
        %v550 = vadd.f32 %v261, %v548
        %s551 = scalar_lea.vmem [#allocation8], 8
        %v552 = vld [vmem:[%s551] sm:$0xff]
        %s553 = scalar_lea.vmem %s3, 4
        %v554 = vld [vmem:[%s553] sm:$0xf]
        %v555 = vmax.f32 %v550, 0.0
        %v557 = vcombine.high %v555, %v555
        %559 = vrot.lane.b32.xlu0 %v555, 17
        %v560 = vpop.permute.xlu0 %559
        %561 = vrot.lane.b32.xlu0 %v557, 17
        %v562 = vpop.permute.xlu0 %561
        %v563 = vsel %vm274, %v560, %v562
        %v564 = vsel %vm274, %v562, %v560
        %v565 = vld [vmem:[#allocation6] sm:$0xf]
        %v566 = vld [vmem:[#allocation6 + $0x8] sm:$0xf]
        %v567 = vmul.f32 %v564, %v565
        %v568 = vmul.f32 %v563, %v566
        %569 = vst [vmem:[#allocation2] sm:$0xf] %v567
        %570 = vst [vmem:[#allocation2 + $0x8] sm:$0xf] %v568
        %571 = vrot.lane.b32.xlu0 %v555, 16
        %v572 = vpop.permute.xlu0 %571
        %573 = vrot.lane.b32.xlu0 %v557, 16
        %v574 = vpop.permute.xlu0 %573
        %v575 = vsel %vm287, %v572, %v574
        %v576 = vsel %vm287, %v574, %v572
        %v577 = vld [vmem:[#allocation6 + $0x10] sm:$0xf]
        %v578 = vld [vmem:[#allocation6 + $0x18] sm:$0xf]
        %v579 = vmul.f32 %v576, %v577
        %v580 = vmul.f32 %v575, %v578
        %581 = vst [vmem:[#allocation2 + $0x10] sm:$0xf] %v579
        %582 = vst [vmem:[#allocation2 + $0x18] sm:$0xf] %v580
        %583 = vrot.lane.b32.xlu0 %v555, 15
        %v584 = vpop.permute.xlu0 %583
        %585 = vrot.lane.b32.xlu0 %v557, 15
        %v586 = vpop.permute.xlu0 %585
        %v587 = vsel %vm300, %v584, %v586
        %v588 = vsel %vm300, %v586, %v584
        %v589 = vld [vmem:[#allocation6 + $0x20] sm:$0xf]
        %v590 = vld [vmem:[#allocation6 + $0x28] sm:$0xf]
        %v591 = vmul.f32 %v588, %v589
        %v592 = vmul.f32 %v587, %v590
        %593 = vst [vmem:[#allocation2 + $0x20] sm:$0xf] %v591
        %594 = vst [vmem:[#allocation2 + $0x28] sm:$0xf] %v592
        %595 = vrot.lane.b32.xlu0 %v555, 1
        %v596 = vpop.permute.xlu0 %595
        %597 = vrot.lane.b32.xlu0 %v557, 1
        %v598 = vpop.permute.xlu0 %597
        %v599 = vsel %vm313, %v596, %v598
        %v600 = vsel %vm313, %v598, %v596
        %v601 = vld [vmem:[#allocation6 + $0x30] sm:$0xf]
        %v602 = vld [vmem:[#allocation6 + $0x38] sm:$0xf]
        %v603 = vmul.f32 %v600, %v601
        %v604 = vmul.f32 %v599, %v602
        %605 = vst [vmem:[#allocation2 + $0x30] sm:$0xf] %v603
        %606 = vst [vmem:[#allocation2 + $0x38] sm:$0xf] %v604
        %607 = vst [vmem:[#allocation2 + $0x40] sm:$0xf] %v555
        %608 = vst [vmem:[#allocation2 + $0x48] sm:$0xf] %v557
        %609 = vrot.lane.b32.xlu0 %v555, 127
        %v610 = vpop.permute.xlu0 %609
        %611 = vrot.lane.b32.xlu0 %v557, 127
        %v612 = vpop.permute.xlu0 %611
        %v613 = vsel %vm328, %v610, %v612
        %v614 = vsel %vm328, %v612, %v610
        %v615 = vld [vmem:[#allocation6 + $0x50] sm:$0xf]
        %v616 = vld [vmem:[#allocation6 + $0x58] sm:$0xf]
        %v617 = vmul.f32 %v613, %v615
        %v618 = vmul.f32 %v614, %v616
        %619 = vst [vmem:[#allocation2 + $0x50] sm:$0xf] %v617
        %620 = vst [vmem:[#allocation2 + $0x58] sm:$0xf] %v618
        %621 = vrot.lane.b32.xlu0 %v555, 113
        %v622 = vpop.permute.xlu0 %621
        %623 = vrot.lane.b32.xlu0 %v557, 113
        %v624 = vpop.permute.xlu0 %623
        %v625 = vsel %vm341, %v622, %v624
        %v626 = vsel %vm341, %v624, %v622
        %v627 = vld [vmem:[#allocation6 + $0x60] sm:$0xf]
        %v628 = vld [vmem:[#allocation6 + $0x68] sm:$0xf]
        %v629 = vmul.f32 %v625, %v627
        %v630 = vmul.f32 %v626, %v628
        %631 = vst [vmem:[#allocation2 + $0x60] sm:$0xf] %v629
        %632 = vst [vmem:[#allocation2 + $0x68] sm:$0xf] %v630
        %633 = vrot.lane.b32.xlu0 %v555, 112
        %v634 = vpop.permute.xlu0 %633
        %635 = vrot.lane.b32.xlu0 %v557, 112
        %v636 = vpop.permute.xlu0 %635
        %v637 = vsel %vm354, %v634, %v636
        %v638 = vsel %vm354, %v636, %v634
        %v639 = vld [vmem:[#allocation6 + $0x70] sm:$0xf]
        %v640 = vld [vmem:[#allocation6 + $0x78] sm:$0xf]
        %v641 = vmul.f32 %v637, %v639
        %v642 = vmul.f32 %v638, %v640
        %643 = vst [vmem:[#allocation2 + $0x70] sm:$0xf] %v641
        %644 = vst [vmem:[#allocation2 + $0x78] sm:$0xf] %v642
        %645 = vrot.lane.b32.xlu0 %v555, 111
        %v646 = vpop.permute.xlu0 %645
        %647 = vrot.lane.b32.xlu0 %v557, 111
        %v648 = vpop.permute.xlu0 %647
        %v649 = vsel %vm367, %v646, %v648
        %v650 = vsel %vm367, %v648, %v646
        %v651 = vld [vmem:[#allocation6 + $0x80] sm:$0xf]
        %v652 = vld [vmem:[#allocation6 + $0x88] sm:$0xf]
        %v653 = vmul.f32 %v649, %v651
        %v654 = vmul.f32 %v650, %v652
        %655 = vst [vmem:[#allocation2 + $0x80] sm:$0xf] %v653
        %656 = vst [vmem:[#allocation2 + $0x88] sm:$0xf] %v654
        %v657 = vld [vmem:[#allocation2] sm:$0xff]
        %v658 = vld [vmem:[#allocation2 + $0x8] sm:$0xff]
        %v659 = vld [vmem:[#allocation2 + $0x10] sm:$0xff]
        %v660 = vld [vmem:[#allocation2 + $0x18] sm:$0xff]
        %v661 = vld [vmem:[#allocation2 + $0x20] sm:$0xff]
        %v662 = vld [vmem:[#allocation2 + $0x28] sm:$0xff]
        %v663 = vld [vmem:[#allocation2 + $0x30] sm:$0xff]
        %v664 = vld [vmem:[#allocation2 + $0x38] sm:$0xff]
        %v665 = vld [vmem:[#allocation2 + $0x40] sm:$0xff]
        %v666 = vld [vmem:[#allocation2 + $0x48] sm:$0xff]
        %v667 = vld [vmem:[#allocation2 + $0x50] sm:$0xff]
        %v668 = vld [vmem:[#allocation2 + $0x58] sm:$0xff]
        %v669 = vld [vmem:[#allocation2 + $0x60] sm:$0xff]
        %v670 = vld [vmem:[#allocation2 + $0x68] sm:$0xff]
        %v671 = vld [vmem:[#allocation2 + $0x70] sm:$0xff]
        %v672 = vld [vmem:[#allocation2 + $0x78] sm:$0xff]
        %v673 = vld [vmem:[#allocation2 + $0x80] sm:$0xff]
        %v674 = vld [vmem:[#allocation2 + $0x88] sm:$0xff]
        %v676 = vsel %vm394, %v552, 0
        %678 = vmatprep.subr.mxu0 %v658
        %679 = vmatpush1.msra.mxu0 %v657
        %680 = vmatprep.subr.mxu0 %v660
        %681 = vmatpush1.msra.mxu0 %v659
        %682 = vmatprep.subr.mxu0 %v662
        %683 = vmatpush1.msra.mxu0 %v661
        %684 = vmatprep.subr.mxu0 %v664
        %685 = vmatpush1.msra.mxu0 %v663
        %686 = vmatprep.subr.mxu0 %v666
        %687 = vmatpush1.msra.mxu0 %v665
        %688 = vmatprep.subr.mxu0 %v668
        %689 = vmatpush1.msra.mxu0 %v667
        %690 = vmatprep.subr.mxu0 %v670
        %691 = vmatpush1.msra.mxu0 %v669
        %692 = vmatprep.subr.mxu0 %v672
        %693 = vmatpush1.msra.mxu0 %v671
        %694 = vmatprep.subr.mxu0 %v674
        %695 = vmatpush1.msra.mxu0 %v673
        %696 = vmatprep.subr.mxu0 0.0
        %697 = vmatpush1.msra.mxu0 0.0
        %698 = vmatprep.subr.mxu0 0.0
        %699 = vmatpush1.msra.mxu0 0.0
        %700 = vmatprep.subr.mxu0 0.0
        %701 = vmatpush1.msra.mxu0 0.0
        %702 = vmatprep.subr.mxu0 0.0
        %703 = vmatpush1.msra.mxu0 0.0
        %704 = vmatprep.subr.mxu0 0.0
        %705 = vmatpush1.msra.mxu0 0.0
        %706 = vmatprep.subr.mxu0 0.0
        %707 = vmatpush1.msra.mxu0 0.0
        %708 = vmatprep.subr.mxu0 0.0
        %709 = vmatpush1.msra.mxu0 0.0
        %710 = vmatprep.subr.mxu0 0.0
        %711 = vmatpush1.msra.mxu0 0.0
        %712 = vmatprep.subr.mxu0 0.0
        %713 = vmatpush1.msra.mxu0 0.0
        %714 = vmatprep.subr.mxu0 0.0
        %715 = vmatpush1.msra.mxu0 0.0
        %716 = vmatprep.subr.mxu0 0.0
        %717 = vmatpush1.msra.mxu0 0.0
        %718 = vmatprep.subr.mxu0 0.0
        %719 = vmatpush1.msra.mxu0 0.0
        %720 = vmatprep.subr.mxu0 0.0
        %721 = vmatpush1.msra.mxu0 0.0
        %722 = vmatprep.subr.mxu0 0.0
        %723 = vmatpush1.msra.mxu0 0.0
        %724 = vmatprep.subr.mxu0 0.0
        %725 = vmatpush1.msra.mxu0 0.0
        %726 = vmatprep.subr.mxu0 0.0
        %727 = vmatpush1.msra.mxu0 0.0
        %728 = vmatprep.subr.mxu0 0.0
        %729 = vmatpush1.msra.mxu0 0.0
        %730 = vmatprep.subr.mxu0 0.0
        %731 = vmatpush1.msra.mxu0 0.0
        %732 = vmatprep.subr.mxu0 0.0
        %733 = vmatpush1.msra.mxu0 0.0
        %734 = vmatprep.subr.mxu0 0.0
        %735 = vmatpush1.msra.mxu0 0.0
        %736 = vmatprep.subr.mxu0 0.0
        %737 = vmatpush1.msra.mxu0 0.0
        %738 = vmatprep.subr.mxu0 0.0
        %739 = vmatpush1.msra.mxu0 0.0
        %740 = vmatprep.subr.mxu0 0.0
        %741 = vmatpush1.msra.mxu0 0.0
        %742 = vmatprep.mubr.f32.mxu0 0.0
        %743 = vmatmul.mubr.f32.gmra.mrb[0].mxu0 %v676
        %v744 = vpop.f32.mrb[0].mxu0
        %v745 = vadd.f32 0.0, %v744
        %v746 = vpop.f32.mrb[0].mxu0
        %v747 = vadd.f32 0.0, %v746
        %748 = vdwg.mxu0
        %v749 = vmax.f32 %v745, 0.0
        %v750 = vmax.f32 %v747, 0.0
        %v752 = vsel %vm471, %v554, 0
        %754 = vmatprep.subr.mxu0 %v750
        %755 = vmatpush1.msra.mxu0 %v749
        %756 = vmatprep.subr.mxu0 0.0
        %757 = vmatpush1.msra.mxu0 0.0
        %758 = vmatprep.subr.mxu0 0.0
        %759 = vmatpush1.msra.mxu0 0.0
        %760 = vmatprep.subr.mxu0 0.0
        %761 = vmatpush1.msra.mxu0 0.0
        %762 = vmatprep.subr.mxu0 0.0
        %763 = vmatpush1.msra.mxu0 0.0
        %764 = vmatprep.subr.mxu0 0.0
        %765 = vmatpush1.msra.mxu0 0.0
        %766 = vmatprep.subr.mxu0 0.0
        %767 = vmatpush1.msra.mxu0 0.0
        %768 = vmatprep.subr.mxu0 0.0
        %769 = vmatpush1.msra.mxu0 0.0
        %770 = vmatprep.subr.mxu0 0.0
        %771 = vmatpush1.msra.mxu0 0.0
        %772 = vmatprep.subr.mxu0 0.0
        %773 = vmatpush1.msra.mxu0 0.0
        %774 = vmatprep.subr.mxu0 0.0
        %775 = vmatpush1.msra.mxu0 0.0
        %776 = vmatprep.subr.mxu0 0.0
        %777 = vmatpush1.msra.mxu0 0.0
        %778 = vmatprep.subr.mxu0 0.0
        %779 = vmatpush1.msra.mxu0 0.0
        %780 = vmatprep.subr.mxu0 0.0
        %781 = vmatpush1.msra.mxu0 0.0
        %782 = vmatprep.subr.mxu0 0.0
        %783 = vmatpush1.msra.mxu0 0.0
        %784 = vmatprep.subr.mxu0 0.0
        %785 = vmatpush1.msra.mxu0 0.0
        %786 = vmatprep.subr.mxu0 0.0
        %787 = vmatpush1.msra.mxu0 0.0
        %788 = vmatprep.subr.mxu0 0.0
        %789 = vmatpush1.msra.mxu0 0.0
        %790 = vmatprep.subr.mxu0 0.0
        %791 = vmatpush1.msra.mxu0 0.0
        %792 = vmatprep.subr.mxu0 0.0
        %793 = vmatpush1.msra.mxu0 0.0
        %794 = vmatprep.subr.mxu0 0.0
        %795 = vmatpush1.msra.mxu0 0.0
        %796 = vmatprep.subr.mxu0 0.0
        %797 = vmatpush1.msra.mxu0 0.0
        %798 = vmatprep.subr.mxu0 0.0
        %799 = vmatpush1.msra.mxu0 0.0
        %800 = vmatprep.subr.mxu0 0.0
        %801 = vmatpush1.msra.mxu0 0.0
        %802 = vmatprep.subr.mxu0 0.0
        %803 = vmatpush1.msra.mxu0 0.0
        %804 = vmatprep.subr.mxu0 0.0
        %805 = vmatpush1.msra.mxu0 0.0
        %806 = vmatprep.subr.mxu0 0.0
        %807 = vmatpush1.msra.mxu0 0.0
        %808 = vmatprep.subr.mxu0 0.0
        %809 = vmatpush1.msra.mxu0 0.0
        %810 = vmatprep.subr.mxu0 0.0
        %811 = vmatpush1.msra.mxu0 0.0
        %812 = vmatprep.subr.mxu0 0.0
        %813 = vmatpush1.msra.mxu0 0.0
        %814 = vmatprep.subr.mxu0 0.0
        %815 = vmatpush1.msra.mxu0 0.0
        %816 = vmatprep.subr.mxu0 0.0
        %817 = vmatpush1.msra.mxu0 0.0
        %818 = vmatprep.mubr.f32.mxu0 0.0
        %819 = vmatmul.mubr.f32.gmra.mrb[0].mxu0 %v752
        %v820 = vpop.f32.mrb[0].mxu0
        %v821 = vadd.f32 0.0, %v820
        %v822 = vpop.f32.mrb[0].mxu0
        %v823 = vadd.f32 0.0, %v822
        %824 = vdwg.mxu0
        %v827 = vcombine.low %v821, %v823
        %v829 = vadd.f32 %v550, %v827
        %v830 = vmax.f32 %v829, 0.0
        %831 = vst [vmem:[%s242] sm:$0xff] %v830
        %s832 = sand.u32 %s119, 1
        %s833 = scalar_lea.sflag [#allocation5], %s832
        %s834 = sand.u32 %s119, 1
        %s835 = smul.addr %s834, 8
        %s836 = scalar_lea.vmem [#allocation9], %s835
        // Predicated region
        $region49: #{tpu_custom_call.1} parent=35 // pred_check
          %p837 = pneg %p129
        $region50: #{tpu_custom_call.1} parent=35 // pred_check_branch
          %839 = sbr.rel (%p837) target = $region52
        $region51: #{tpu_custom_call.1} parent=35 // pred_region
          %s841 = ssub.s32 128, 128
          %842 = vsyncadd %s833, %s841
          %s843 = smul.addr %s22, 2
          %s844 = smul.addr %s843, 64
          %s845 = scalar_lea.hbm %s4, %s844
          %s847 = sshll.u32 %s836, 4
          %s848 = int_to_ptr.vmem [resolvable:$true] %s847
          %850 = dma.vmem_to_hbm [thread:$0]  %s848, 128, %s845, %s833
        $region52: #{tpu_custom_call.1} parent=35 // pred_fallthru
          _
      $region36: #{tpu_custom_call.1} parent=5 // pred_fallthru
        _
      %p851 = scmp.le.s32.totalorder 2, %s17
      // Predicated region
      $region53: #{tpu_custom_call.1} parent=5 // pred_check
        %p852 = pneg %p851
      $region54: #{tpu_custom_call.1} parent=5 // pred_check_branch
        %854 = sbr.rel (%p852) target = $region56
      $region55: #{tpu_custom_call.1} parent=5 // pred_region
        %s855 = ssub.s32 %s17, 2
        // Predicated region
        $region57: #{tpu_custom_call.1} parent=55 // pred_check
          %p856 = pneg %p135
        $region58: #{tpu_custom_call.1} parent=55 // pred_check_branch
          %858 = sbr.rel (%p856) target = $region60
        $region59: #{tpu_custom_call.1} parent=55 // pred_region
          %s859 = sand.u32 %s120, 1
          %s860 = scalar_lea.sflag [#allocation5], %s859
          %s861 = sand.u32 %s120, 1
          %s862 = smul.addr %s861, 8
          %s863 = scalar_lea.vmem [#allocation9], %s862
          %864 = dma.done %s860, 128
        $region60: #{tpu_custom_call.1} parent=55 // pred_fallthru
          _
      $region56: #{tpu_custom_call.1} parent=5 // pred_fallthru
        _
    $region6: #{tpu_custom_call.1} parent=1 // loop_footer
      %s21 = sadd.s32 1, %s17
    $region7: #{tpu_custom_call.1} parent=1 // loop_footer_branch
      %16 = sbr.rel target = $region3
    $region8: #{tpu_custom_call.1} parent=1 // loop_exit
      _
    %865 = vsyncpa [#allocation4], 1
    %s866 = scalar_lea.sflag [#allocation4], 1
    %867 = vsyncpa %s866, 1
    %868 = vsyncpa [#allocation7], 1
    %869 = vsyncpa [#allocation5], 1
    %s870 = scalar_lea.sflag [#allocation5], 1
    %871 = vsyncpa %s870, 1

</llo_original>
